<compile_context>
chip_gen: v7x
topology: tpu7x:2x2x1
jax: 0.10.0
libtpu: 0.0.40
codegen_flags: <defaults>
</compile_context>

<pallas_src>
import functools

import jax
import jax.numpy as jnp
from jax.experimental import pallas as pl
from jax.experimental.pallas import tpu as pltpu

GAMMA = 2          # focusing parameter (module default)
_PACK = 8          # samples packed per column group -> every f32 sublane is full
_DEF_CHUNK = 1024  # lane columns per inner compute strip
_MAX_CHUNKS = 16   # cap on the fully-unrolled in-kernel strip loop


def _round_up(x, m):
    return ((x + m - 1) // m) * m


def _ce_sum_kernel(x_ref, t_ref, out_ref, *, num_classes, n_cols, tile_cols,
                   chunk, tiles_per_part):
    """Accumulates lane-resident partial sums of per-sample cross-entropy.

    x_ref  : (num_classes*8, tile_cols) logits, class-major sublane-packed
    t_ref  : (8, tile_cols)             int32 target class per sample
    out_ref: (8, chunk)                 f32 partial-sum accumulator (output block)
    """
    p = pl.program_id(0)           # partition ("parallel") axis
    t = pl.program_id(1)           # reduction over sample tiles ("arbitrary")

    @pl.when(t == 0)
    def _init():
        out_ref[...] = jnp.zeros_like(out_ref)

    # Unclamped logical tile start; fully out-of-range tiles (odd tile counts with
    # two partitions) are masked to zero below, so they contribute nothing.
    base_col = (p * tiles_per_part + t) * tile_cols
    n_chunks = tile_cols // chunk

    def process_chunk(j, carry):
        off = j * chunk
        if chunk % 128 == 0 and not isinstance(off, int):
            off = pl.multiple_of(off, 128)
        cols = pl.ds(off, chunk)

        # Pass 1: per-sample max over classes.  Each class is a contiguous, fully
        # dense (8, chunk) sublane slab, so this is pure VPU work.
        m = x_ref[pl.ds(0, _PACK), cols].astype(jnp.float32)
        for k in range(1, num_classes):
            m = jnp.maximum(
                m, x_ref[pl.ds(_PACK * k, _PACK), cols].astype(jnp.float32))

        # Pass 2: sum-of-exp and target-logit gather.  Class slabs are reloaded
        # from VMEM (vld is cheap) to keep vreg pressure low inside the strip.
        tgt = t_ref[:, cols]                                    # (8, chunk) int32
        sum_exp = jnp.zeros_like(m)
        tgt_logit = jnp.zeros_like(m)
        for k in range(num_classes):
            xk = x_ref[pl.ds(_PACK * k, _PACK), cols].astype(jnp.float32)
            sum_exp = sum_exp + jnp.exp(xk - m)
            tgt_logit = tgt_logit + jnp.where(tgt == k, xk, 0.0)

        ce = m + jnp.log(sum_exp) - tgt_logit                   # (8, chunk)

        # Ragged / out-of-range column mask.  Must stay a select (jnp.where):
        # padding columns hold garbage that already went through exp/log.
        col = base_col + off + jax.lax.broadcasted_iota(jnp.int32, (1, chunk), 1)
        out_ref[...] += jnp.where(col < n_cols, ce, 0.0)
        return carry

    if n_chunks == 1:
        process_chunk(0, 0)
    else:
        jax.lax.fori_loop(0, n_chunks, process_chunk, 0, unroll=True)


def _default_num_parts():
    # A second "parallel" reduction partition only pays off on chips with two
    # TensorCores (v7x); on v5e/v6e it just adds an extra init plus possibly one
    # wasted clamped tile of HBM traffic.
    try:
        kind = jax.devices()[0].device_kind.lower()
    except Exception:
        return 1
    return 2 if "v7" in kind else 1


def _choose_tile_cols(num_classes, itemsize, chunk):
    # Target ~2 MiB of fresh input per grid step so the ~0.35 us per-step pipeline
    # overhead stays well below the DMA time on every generation, while the
    # double-buffered working set (a few MiB) stays far inside v7x's 64 MiB VMEM.
    bytes_per_col = _PACK * num_classes * itemsize + _PACK * 4
    tile = (2 * 1024 * 1024) // max(1, bytes_per_col)
    tile = max(chunk, (tile // chunk) * chunk)
    return min(tile, _MAX_CHUNKS * chunk)


def _ce_sum_pallas(x_main, tgt_main, tile_cols=None, chunk=None, num_parts=None):
    """Sum of per-sample cross-entropy over the first (N // 8) * 8 samples."""
    n_main, num_classes = x_main.shape
    n_cols = n_main // _PACK
    itemsize = x_main.dtype.itemsize

    if chunk is None:
        chunk = _DEF_CHUNK
    if tile_cols is not None:
        chunk = min(chunk, tile_cols)
    chunk = min(chunk, n_cols)
    if chunk < n_cols and chunk % 128 != 0:
        raise ValueError("chunk must be a multiple of 128 (or cover all columns)")

    if tile_cols is None:
        if n_cols <= chunk:
            tile_cols = n_cols
        else:
            tile_cols = _choose_tile_cols(num_classes, itemsize, chunk)
    tile_cols = max(chunk, min(tile_cols, _round_up(n_cols, chunk)))
    if tile_cols % chunk != 0 or (tile_cols % 128 != 0 and tile_cols != n_cols):
        raise ValueError("tile_cols must be a multiple of chunk and 128-aligned "
                         "(unless it covers all columns)")

    n_tiles = pl.cdiv(n_cols, tile_cols)
    if num_parts is None:
        num_parts = _default_num_parts()
    num_parts = int(max(1, min(num_parts, n_tiles)))
    tiles_per_part = pl.cdiv(n_tiles, num_parts)

    # Class-major, sublane-packed layout: row (c*8 + r), column j  <->  sample
    # 8*j + r, class c.  Native dtype is preserved; the f32 cast happens on the
    # VMEM-resident chunk inside the kernel.
    # TODO(synk): callers that already hold this layout should pass it directly
    # and skip this one remaining full-size XLA transpose.
    x_pack = (x_main.reshape(n_cols, _PACK, num_classes)
              .transpose(2, 1, 0)
              .reshape(num_classes * _PACK, n_cols))
    t_pack = tgt_main.reshape(n_cols, _PACK).T                  # (8, n_cols) int32

    kernel = functools.partial(
        _ce_sum_kernel, num_classes=num_classes, n_cols=n_cols,
        tile_cols=tile_cols, chunk=chunk, tiles_per_part=tiles_per_part)

    def in_index(p, t):
        # Clamp so an out-of-range trailing tile (odd tile count, 2 partitions)
        # re-reads valid data; its contribution is masked to zero in the kernel.
        return (0, jnp.minimum(p * tiles_per_part + t, n_tiles - 1))

    in_block_bytes = num_classes * _PACK * tile_cols * itemsize
    tgt_block_bytes = _PACK * tile_cols * 4
    vmem_limit = int(min(28 * 2 ** 20,
                         max(8 * 2 ** 20,
                             2 * (in_block_bytes + tgt_block_bytes) + 4 * 2 ** 20)))

    cost = pl.CostEstimate(
        flops=int(30 * n_main * num_classes),
        transcendentals=int(n_main * (num_classes + 1)),
        bytes_accessed=int(n_main * num_classes * itemsize + n_main * 4
                           + num_parts * _PACK * chunk * 4))

    partials = pl.pallas_call(
        kernel,
        grid=(num_parts, tiles_per_part),
        in_specs=[pl.BlockSpec((num_classes * _PACK, tile_cols), in_index),
                  pl.BlockSpec((_PACK, tile_cols), in_index)],
        out_specs=pl.BlockSpec((_PACK, chunk), lambda p, t: (p, 0)),
        out_shape=jax.ShapeDtypeStruct((num_parts * _PACK, chunk), jnp.float32),
        compiler_params=pltpu.CompilerParams(
            dimension_semantics=("parallel", "arbitrary"),
            vmem_limit_bytes=vmem_limit),
        cost_estimate=cost,
    )(x_pack, t_pack)

    # Single tiny cross-lane reduction, done in XLA on (num_parts*8, chunk) f32.
    return jnp.sum(partials)


def focal_loss_without_confidence(inputs, targets, alpha, gamma=GAMMA,
                                  tile_cols=None, chunk=None, num_parts=None):
    """inputs: (N, C) logits, targets: (N, C) one-hot-ish scores, alpha: (C,)."""
    N, C = inputs.shape
    assert targets.shape == (N, C)
    alpha = jnp.asarray(alpha).reshape(C)

    # torch: targets.clone().long() -> argmax(dim=1)  (truncating cast, first-max
    # tie-break).  Done once in XLA so the kernel never reads the (N, C) targets.
    tgt_idx = jnp.argmax(targets.astype(jnp.int32), axis=1).astype(jnp.int32)

    n_main = (N // _PACK) * _PACK

    ce_sum = jnp.float32(0.0)
    if n_main > 0:
        ce_sum = _ce_sum_pallas(inputs[:n_main], tgt_idx[:n_main],
                                tile_cols=tile_cols, chunk=chunk,
                                num_parts=num_parts)
    if n_main < N:
        # Fewer than 8 leftover samples: finish them with a handful of XLA ops.
        x_r = inputs[n_main:].astype(jnp.float32)
        t_r = tgt_idx[n_main:]
        m_r = jnp.max(x_r, axis=1, keepdims=True)
        lse_r = m_r[:, 0] + jnp.log(jnp.sum(jnp.exp(x_r - m_r), axis=1))
        x_t = jnp.take_along_axis(x_r, t_r[:, None], axis=1)[:, 0]
        ce_sum = ce_sum + jnp.sum(lse_r - x_t)

    ce_loss = ce_sum / N
    pt = jnp.exp(-ce_loss)
    # alpha[targets_long].mean() only touches tgt_idx + a length-C table; doing it
    # in XLA keeps alpha (and a second gather) out of the kernel entirely.
    alpha_mean = jnp.mean(alpha[tgt_idx].astype(jnp.float32))
    return alpha_mean * (1.0 - pt) ** gamma * ce_loss


def _reference(inputs, targets, alpha, gamma=GAMMA):
    """Pure-JAX reference mirroring the PyTorch forward."""
    tgt = jnp.argmax(targets.astype(jnp.int32), axis=1)
    logp = jax.nn.log_softmax(inputs.astype(jnp.float32), axis=1)
    ce = -jnp.take_along_axis(logp, tgt[:, None], axis=1)[:, 0]
    ce_loss = jnp.mean(ce)
    pt = jnp.exp(-ce_loss)
    return jnp.mean(alpha[tgt] * (1.0 - pt) ** gamma * ce_loss)


if __name__ == "__main__":
    key = jax.random.PRNGKey(0)
    k1, k2, k3, k4 = jax.random.split(key, 4)

    C = 4
    alpha = jnp.linspace(0.25, 1.0, C, dtype=jnp.float32)

    # Case 1: small batch with a ragged (non multiple of 8) tail handled by the
    # XLA epilogue; single tile, single chunk.
    N1 = 300
    x1 = jax.random.normal(k1, (N1, C), dtype=jnp.float32)
    y1 = jax.nn.one_hot(jax.random.randint(k2, (N1,), 0, C), C, dtype=jnp.float32)
    out1 = focal_loss_without_confidence(x1, y1, alpha)
    jax.block_until_ready(out1)
    ref1 = _reference(x1, y1, alpha)
    assert jnp.allclose(out1, ref1, rtol=1e-4, atol=1e-5), (out1, ref1)

    # Case 2: bf16 logits, forced multi-tile / two-partition / chunked path with a
    # ragged last tile and a clamped fully-masked trailing tile on partition 1.
    N2 = 9000
    x2 = jax.random.normal(k3, (N2, C), dtype=jnp.bfloat16)
    y2 = jax.nn.one_hot(jax.random.randint(k4, (N2,), 0, C), C, dtype=jnp.float32)
    out2 = focal_loss_without_confidence(x2, y2, alpha,
                                         tile_cols=512, chunk=128, num_parts=2)
    jax.block_until_ready(out2)
    ref2 = _reference(x2, y2, alpha)
    assert jnp.allclose(out2, ref2, rtol=1e-4, atol=1e-4), (out2, ref2)

    print("KERNEL_OK")
</pallas_src>

<mosaic_0001>
module attributes {stable_mosaic.version = 11 : i64} {
  func.func @_ce_sum_kernel(%arg0: i32, %arg1: i32, %arg2: memref<32x37xf32, #tpu.memory_space<vmem>>, %arg3: memref<8x37xi32, #tpu.memory_space<vmem>>, %arg4: memref<8x37xf32, #tpu.memory_space<vmem>>) attributes {dimension_semantics = [#tpu.dimension_semantics<parallel>, #tpu.dimension_semantics<arbitrary>], iteration_bounds = array<i64: 1, 1>, scalar_prefetch = 0 : i64, scratch_operands = 0 : i64, tpu.core_type = #tpu.core_type<tc>, window_params = [{transform_indices = @transform_0, window_bounds = array<i64: 32, 37>}, {transform_indices = @transform_1, window_bounds = array<i64: 8, 37>}, {transform_indices = @transform_2, window_bounds = array<i64: 8, 37>}]} {
    %c0_i32 = arith.constant 0 : i32
    %0 = arith.cmpi eq, %arg1, %c0_i32 : i32
    %1 = arith.extui %0 : i1 to i32
    %c0_i32_0 = arith.constant 0 : i32
    %2 = arith.cmpi ne, %1, %c0_i32_0 : i32
    scf.if %2 {
      %cst_29 = arith.constant 0.000000e+00 : f32
      %68 = vector.broadcast %cst_29 : f32 to vector<8x37xf32>
      %c0_30 = arith.constant 0 : index
      %c0_31 = arith.constant 0 : index
      %69 = vector.load %arg4[%c0_30, %c0_31] : memref<8x37xf32, #tpu.memory_space<vmem>>, vector<8x37xf32>
      tpu.vector_store %arg4[%c0_30, %c0_31], %68 {strides = array<i32>} : memref<8x37xf32, #tpu.memory_space<vmem>>, vector<8x37xf32>,
    } else {
    }
    %c1_i32 = arith.constant 1 : i32
    %3 = arith.muli %arg0, %c1_i32 : i32
    %4 = arith.addi %3, %arg1 : i32
    %c37_i32 = arith.constant 37 : i32
    %5 = arith.muli %4, %c37_i32 : i32
    %c0 = arith.constant 0 : index
    %c0_1 = arith.constant 0 : index
    %6 = vector.load %arg2[%c0, %c0_1] : memref<32x37xf32, #tpu.memory_space<vmem>>, vector<8x37xf32>
    %c8 = arith.constant 8 : index
    %c0_2 = arith.constant 0 : index
    %7 = vector.load %arg2[%c8, %c0_2] : memref<32x37xf32, #tpu.memory_space<vmem>>, vector<8x37xf32>
    %8 = arith.maximumf %6, %7 : vector<8x37xf32>
    %c16 = arith.constant 16 : index
    %c0_3 = arith.constant 0 : index
    %9 = vector.load %arg2[%c16, %c0_3] : memref<32x37xf32, #tpu.memory_space<vmem>>, vector<8x37xf32>
    %10 = arith.maximumf %8, %9 : vector<8x37xf32>
    %c24 = arith.constant 24 : index
    %c0_4 = arith.constant 0 : index
    %11 = vector.load %arg2[%c24, %c0_4] : memref<32x37xf32, #tpu.memory_space<vmem>>, vector<8x37xf32>
    %12 = arith.maximumf %10, %11 : vector<8x37xf32>
    %c0_5 = arith.constant 0 : index
    %c0_6 = arith.constant 0 : index
    %13 = vector.load %arg3[%c0_5, %c0_6] : memref<8x37xi32, #tpu.memory_space<vmem>>, vector<8x37xi32>
    %cst = arith.constant 0.000000e+00 : f32
    %14 = vector.broadcast %cst : f32 to vector<8x37xf32>
    %cst_7 = arith.constant 0.000000e+00 : f32
    %15 = vector.broadcast %cst_7 : f32 to vector<8x37xf32>
    %c0_8 = arith.constant 0 : index
    %c0_9 = arith.constant 0 : index
    %16 = vector.load %arg2[%c0_8, %c0_9] : memref<32x37xf32, #tpu.memory_space<vmem>>, vector<8x37xf32>
    %17 = arith.subf %16, %12 : vector<8x37xf32>
    %18 = math.exp %17 : vector<8x37xf32>
    %19 = arith.addf %14, %18 : vector<8x37xf32>
    %c0_i32_10 = arith.constant 0 : i32
    %20 = vector.broadcast %c0_i32_10 : i32 to vector<8x37xi32>
    %21 = arith.cmpi eq, %13, %20 : vector<8x37xi32>
    %cst_11 = arith.constant 0.000000e+00 : f32
    %22 = vector.broadcast %cst_11 : f32 to vector<8x37xf32>
    %23 = arith.select %21, %16, %22 : vector<8x37xi1>, vector<8x37xf32>
    %24 = arith.addf %15, %23 : vector<8x37xf32>
    %c8_12 = arith.constant 8 : index
    %c0_13 = arith.constant 0 : index
    %25 = vector.load %arg2[%c8_12, %c0_13] : memref<32x37xf32, #tpu.memory_space<vmem>>, vector<8x37xf32>
    %26 = arith.subf %25, %12 : vector<8x37xf32>
    %27 = math.exp %26 : vector<8x37xf32>
    %28 = arith.addf %19, %27 : vector<8x37xf32>
    %c1_i32_14 = arith.constant 1 : i32
    %29 = vector.broadcast %c1_i32_14 : i32 to vector<8x37xi32>
    %30 = arith.cmpi eq, %13, %29 : vector<8x37xi32>
    %cst_15 = arith.constant 0.000000e+00 : f32
    %31 = vector.broadcast %cst_15 : f32 to vector<8x37xf32>
    %32 = arith.select %30, %25, %31 : vector<8x37xi1>, vector<8x37xf32>
    %33 = arith.addf %24, %32 : vector<8x37xf32>
    %c16_16 = arith.constant 16 : index
    %c0_17 = arith.constant 0 : index
    %34 = vector.load %arg2[%c16_16, %c0_17] : memref<32x37xf32, #tpu.memory_space<vmem>>, vector<8x37xf32>
    %35 = arith.subf %34, %12 : vector<8x37xf32>
    %36 = math.exp %35 : vector<8x37xf32>
    %37 = arith.addf %28, %36 : vector<8x37xf32>
    %c2_i32 = arith.constant 2 : i32
    %38 = vector.broadcast %c2_i32 : i32 to vector<8x37xi32>
    %39 = arith.cmpi eq, %13, %38 : vector<8x37xi32>
    %cst_18 = arith.constant 0.000000e+00 : f32
    %40 = vector.broadcast %cst_18 : f32 to vector<8x37xf32>
    %41 = arith.select %39, %34, %40 : vector<8x37xi1>, vector<8x37xf32>
    %42 = arith.addf %33, %41 : vector<8x37xf32>
    %c24_19 = arith.constant 24 : index
    %c0_20 = arith.constant 0 : index
    %43 = vector.load %arg2[%c24_19, %c0_20] : memref<32x37xf32, #tpu.memory_space<vmem>>, vector<8x37xf32>
    %44 = arith.subf %43, %12 : vector<8x37xf32>
    %45 = math.exp %44 : vector<8x37xf32>
    %46 = arith.addf %37, %45 : vector<8x37xf32>
    %c3_i32 = arith.constant 3 : i32
    %47 = vector.broadcast %c3_i32 : i32 to vector<8x37xi32>
    %48 = arith.cmpi eq, %13, %47 : vector<8x37xi32>
    %cst_21 = arith.constant 0.000000e+00 : f32
    %49 = vector.broadcast %cst_21 : f32 to vector<8x37xf32>
    %50 = arith.select %48, %43, %49 : vector<8x37xi1>, vector<8x37xf32>
    %51 = arith.addf %42, %50 : vector<8x37xf32>
    %52 = math.log %46 : vector<8x37xf32>
    %53 = arith.addf %12, %52 : vector<8x37xf32>
    %54 = arith.subf %53, %51 : vector<8x37xf32>
    %c0_i32_22 = arith.constant 0 : i32
    %55 = arith.addi %5, %c0_i32_22 : i32
    %56 = tpu.iota {dimensions = array<i32: 1>} : vector<1x37xi32>
    %57 = vector.broadcast %55 : i32 to vector<1x37xi32>
    %58 = arith.addi %57, %56 : vector<1x37xi32>
    %c0_23 = arith.constant 0 : index
    %c0_24 = arith.constant 0 : index
    %59 = vector.load %arg4[%c0_23, %c0_24] : memref<8x37xf32, #tpu.memory_space<vmem>>, vector<8x37xf32>
    %c37_i32_25 = arith.constant 37 : i32
    %60 = vector.broadcast %c37_i32_25 : i32 to vector<1x37xi32>
    %61 = arith.cmpi slt, %58, %60 : vector<1x37xi32>
    %cst_26 = arith.constant 0.000000e+00 : f32
    %62 = vector.shape_cast %61 : vector<1x37xi1> to vector<1x37xi1>
    %63 = vector.broadcast %62 : vector<1x37xi1> to vector<8x37xi1>
    %64 = vector.broadcast %cst_26 : f32 to vector<8x37xf32>
    %65 = arith.select %63, %54, %64 : vector<8x37xi1>, vector<8x37xf32>
    %66 = arith.addf %59, %65 : vector<8x37xf32>
    %c0_27 = arith.constant 0 : index
    %c0_28 = arith.constant 0 : index
    %67 = vector.load %arg4[%c0_27, %c0_28] : memref<8x37xf32, #tpu.memory_space<vmem>>, vector<8x37xf32>
    tpu.vector_store %arg4[%c0_27, %c0_28], %66 {strides = array<i32>} : memref<8x37xf32, #tpu.memory_space<vmem>>, vector<8x37xf32>,
    return
  }
  func.func @transform_0(%arg0: i32, %arg1: i32) -> (i32, i32) {
    %c1_i32 = arith.constant 1 : i32
    %0 = arith.muli %arg0, %c1_i32 : i32
    %1 = arith.addi %0, %arg1 : i32
    %c0_i32 = arith.constant 0 : i32
    %2 = arith.minsi %1, %c0_i32 : i32
    %c0_i32_0 = arith.constant 0 : i32
    %c0_i32_1 = arith.constant 0 : i32
    return %c0_i32_0, %2 : i32, i32
  }
  func.func @transform_1(%arg0: i32, %arg1: i32) -> (i32, i32) {
    %c1_i32 = arith.constant 1 : i32
    %0 = arith.muli %arg0, %c1_i32 : i32
    %1 = arith.addi %0, %arg1 : i32
    %c0_i32 = arith.constant 0 : i32
    %2 = arith.minsi %1, %c0_i32 : i32
    %c0_i32_0 = arith.constant 0 : i32
    %c0_i32_1 = arith.constant 0 : i32
    return %c0_i32_0, %2 : i32, i32
  }
  func.func @transform_2(%arg0: i32, %arg1: i32) -> (i32, i32) {
    %c0_i32 = arith.constant 0 : i32
    %c0_i32_0 = arith.constant 0 : i32
    return %arg0, %c0_i32 : i32, i32
  }
}

</mosaic_0001>

<llo_original>
// kernel: tpu_custom_call.1
$region0: #{tpu_custom_call.1}
  #allocation0 [shape = 'u32[]', space=smem, size = 0x4, offset = 0x4, fixed_abs, tag = 'smem constant byte address 0x4 - core index']
  #allocation1 [shape = 'u32[144,128]{1,0:T(1,128)}', space=vmem, size = 0x12000, scoped, tag = 'internal scratch']
  %s0 = inlined_call_operand.hbm [shape: f32[32,37], index: 0, kind: input, shape index: {}]
  %s1 = inlined_call_operand.hbm [shape: s32[8,37], index: 1, kind: input, shape index: {}]
  %s2 = inlined_call_operand.hbm [shape: f32[8,37], index: 2, kind: output, shape index: {}]
  %s3 = sld [smem:[#allocation0]]
  $region30: #{tpu_custom_call.1} parent=0
    _
  %s5 = ssub.s32 1, %s3
  %s6 = scalar_select 0, %s5, %s3
  $region1: #{tpu_custom_call.1} parent=0
    #allocation2 [shape = 'u8[16384]{0}', space=vmem, size = 0x4000, scoped, tag = 'input window, operand 0, single buffered']
    #allocation3 [shape = 's32[1]{0}', space=sflag, size = 0x4, scoped, tag = 'scoped memory for tpu_custom_call.1']
    #allocation4 [shape = 's32[1]{0}', space=sflag, size = 0x4, scoped, tag = 'scoped memory for tpu_custom_call.1']
    #allocation5 [shape = 'u8[4096]{0}', space=vmem, size = 0x1000, scoped, tag = 'input window, operand 1, single buffered']
    #allocation6 [shape = 's32[1]{0}', space=sflag, size = 0x4, scoped, tag = 'scoped memory for tpu_custom_call.1']
    #allocation7 [shape = 'u8[4096]{0}', space=vmem, size = 0x1000, scoped, tag = 'output window, operand 0, single buffered']
    %7 = vsyncpa [#allocation3], 0
    %8 = vsyncpa [#allocation6], 0
    %9 = vsyncpa [#allocation4], 0
    // Predicated region
    $region2: #{tpu_custom_call.1} parent=1 // pred_check
      _
    $region3: #{tpu_custom_call.1} parent=1 // pred_check_branch
      %11 = sbr.rel (0) target = $region5
    $region4: #{tpu_custom_call.1} parent=1 // pred_region
      %s12 = sadd.s32 0, 0
      %p13 = scmp.lt.s32.totalorder %s12, 0
      %s14 = scalar_select %p13, %s12, 0
      %s16 = ssub.s32 512, 512
      %17 = vsyncadd [#allocation3], %s16
      %s18 = smul.addr %s14, 128
      %s19 = scalar_lea.hbm %s0, %s18
      %s20 = sshll.u32 [#allocation2], 4
      %s21 = int_to_ptr.vmem [resolvable:$true] %s20
      %26 = dma.hbm_to_vmem [thread:$0]  %s19, 512, %s21, [#allocation3], 128, 128, 8
    $region5: #{tpu_custom_call.1} parent=1 // pred_fallthru
      _
    // Predicated region
    $region6: #{tpu_custom_call.1} parent=1 // pred_check
      _
    $region7: #{tpu_custom_call.1} parent=1 // pred_check_branch
      %28 = sbr.rel (0) target = $region9
    $region8: #{tpu_custom_call.1} parent=1 // pred_region
      %s29 = sadd.s32 0, 0
      %p30 = scmp.lt.s32.totalorder %s29, 0
      %s31 = scalar_select %p30, %s29, 0
      %s33 = ssub.s32 128, 128
      %34 = vsyncadd [#allocation6], %s33
      %s35 = smul.addr %s31, 128
      %s36 = scalar_lea.hbm %s1, %s35
      %s38 = sshll.u32 [#allocation5], 4
      %s39 = int_to_ptr.vmem [resolvable:$true] %s38
      %41 = dma.hbm_to_vmem [thread:$0]  %s36, 128, %s39, [#allocation6]
    $region9: #{tpu_custom_call.1} parent=1 // pred_fallthru
      _
    // Predicated region
    $region10: #{tpu_custom_call.1} parent=1 // pred_check
      _
    $region11: #{tpu_custom_call.1} parent=1 // pred_check_branch
      %43 = sbr.rel (0) target = $region13
    $region12: #{tpu_custom_call.1} parent=1 // pred_region
      %44 = dma.done [#allocation3], 512
    $region13: #{tpu_custom_call.1} parent=1 // pred_fallthru
      _
    // Predicated region
    $region14: #{tpu_custom_call.1} parent=1 // pred_check
      _
    $region15: #{tpu_custom_call.1} parent=1 // pred_check_branch
      %46 = sbr.rel (0) target = $region17
    $region16: #{tpu_custom_call.1} parent=1 // pred_region
      %47 = dma.done [#allocation6], 128
    $region17: #{tpu_custom_call.1} parent=1 // pred_fallthru
      _
    %s48 = sadd.s32 0, 0
    %p49 = scmp.lt.s32.totalorder %s48, 0
    %s50 = scalar_select %p49, %s48, 0
    %s51 = sadd.s32 0, 0
    %p52 = scmp.lt.s32.totalorder %s51, 0
    %s53 = scalar_select %p52, %s51, 0
    %p54 = scmp.eq.s32.totalorder 0, 0
    // Predicated region
    $region18: #{tpu_custom_call.1} parent=1 // pred_check
      %p55 = pneg %p54
    $region19: #{tpu_custom_call.1} parent=1 // pred_check_branch
      %57 = sbr.rel (%p55) target = $region21
    $region20: #{tpu_custom_call.1} parent=1 // pred_region
      %vm58 = vcmask 302080
      %59 = vst.msk [vmem:[#allocation7] sm:$0xff] %vm58, 0.0
    $region21: #{tpu_custom_call.1} parent=1 // pred_fallthru
      _
    %s60 = sadd.s32 0, 0
    %s61 = smul.u32 %s60, 37
    %v62 = vld [vmem:[#allocation2] sm:$0xff]
    %v63 = vld [vmem:[#allocation2 + $0x8] sm:$0xff]
    %v64 = vmax.f32 %v62, %v63
    %v65 = vld [vmem:[#allocation2 + $0x10] sm:$0xff]
    %v66 = vmax.f32 %v64, %v65
    %v67 = vld [vmem:[#allocation2 + $0x18] sm:$0xff]
    %v68 = vmax.f32 %v66, %v67
    %v69 = vld [vmem:[#allocation5] sm:$0xff]
    %v70 = vsub.f32 %v62, %v68
    %v71 = vmul.f32 %v70, 1.442695
    %v72 = vpow.pop %v71
    %v73 = vadd.f32 %v72, 0.0
    %vm74 = vcmp.eq.s32.totalorder %v69, 0
    %v75 = vsel %vm74, %v62, 0.0
    %v76 = vadd.f32 %v75, 0.0
    %v77 = vsub.f32 %v63, %v68
    %v78 = vmul.f32 %v77, 1.442695
    %v79 = vpow.pop %v78
    %v80 = vadd.f32 %v73, %v79
    %vm81 = vcmp.eq.s32.totalorder %v69, 1
    %v82 = vsel %vm81, %v63, 0.0
    %v83 = vadd.f32 %v76, %v82
    %v84 = vsub.f32 %v65, %v68
    %v85 = vmul.f32 %v84, 1.442695
    %v86 = vpow.pop %v85
    %v87 = vadd.f32 %v80, %v86
    %vm88 = vcmp.eq.s32.totalorder %v69, 2
    %v89 = vsel %vm88, %v65, 0.0
    %v90 = vadd.f32 %v83, %v89
    %v91 = vsub.f32 %v67, %v68
    %v92 = vmul.f32 %v91, 1.442695
    %v93 = vpow.pop %v92
    %v94 = vadd.f32 %v87, %v93
    %vm95 = vcmp.eq.s32.totalorder %v69, 3
    %v96 = vsel %vm95, %v67, 0.0
    %v97 = vadd.f32 %v90, %v96
    %v98 = vlog2.pop %v94
    %v99 = vmul.f32 %v98, 0.6931472
    %v100 = vadd.f32 %v68, %v99
    %v101 = vsub.f32 %v100, %v97
    %v102 = vlaneseq
    %v103 = vand.u32 %v102, 127
    %v104 = vstv %s61
    %v105 = vadd.s32 %v104, %v103
    %v106 = vld [vmem:[#allocation7] sm:$0xff]
    %vm107 = vcmp.lt.s32.totalorder %v105, 37
    %v108 = vsel %vm107, 1, 0
    %vm109 = vcmp.eq.s32.totalorder %v108, 1
    %v110 = vsel %vm109, %v101, 0.0
    %v111 = vadd.f32 %v106, %v110
    %vm112 = vcmask 302080
    %113 = vst.msk [vmem:[#allocation7] sm:$0xff] %vm112, %v111
    // Predicated region
    $region22: #{tpu_custom_call.1} parent=1 // pred_check
      _
    $region23: #{tpu_custom_call.1} parent=1 // pred_check_branch
      %115 = sbr.rel (0) target = $region25
    $region24: #{tpu_custom_call.1} parent=1 // pred_region
      %s117 = ssub.s32 128, 128
      %118 = vsyncadd [#allocation4], %s117
      %s120 = sshll.u32 [#allocation7], 4
      %s121 = int_to_ptr.vmem [resolvable:$true] %s120
      %123 = dma.vmem_to_hbm [thread:$0]  %s121, 128, %s2, [#allocation4]
    $region25: #{tpu_custom_call.1} parent=1 // pred_fallthru
      _
    // Predicated region
    $region26: #{tpu_custom_call.1} parent=1 // pred_check
      _
    $region27: #{tpu_custom_call.1} parent=1 // pred_check_branch
      %125 = sbr.rel (0) target = $region29
    $region28: #{tpu_custom_call.1} parent=1 // pred_region
      %126 = dma.done [#allocation4], 128
    $region29: #{tpu_custom_call.1} parent=1 // pred_fallthru
      _
    %127 = vsyncpa [#allocation3], 1
    %128 = vsyncpa [#allocation6], 1
    %129 = vsyncpa [#allocation4], 1

</llo_original>
